<compile_context>
chip_gen: v7x
topology: tpu7x:2x2x1
jax: 0.10.0
libtpu: 0.0.40
codegen_flags: <defaults>
</compile_context>

<pallas_src>
import functools
import math

import jax
import jax.numpy as jnp
from jax.experimental import pallas as pl
from jax.experimental.pallas import tpu as pltpu

VMEM_LIMIT = 32 * 1024 * 1024     # explicit scoped-VMEM limit (>= v5e's 16 MiB default)

TM_CAP = 256        # rows per grid step for the dense kernels
LN_TM_CAP = 512     # rows per grid step for the plain LayerNorm
POOL_TS_CAP = 128   # sequence-chunk length for the pooling kernel


def _pick_tile(dim, cap, align):
    """Largest aligned tile <= cap that evenly divides dim (full dim if it already fits)."""
    if dim <= cap:
        return dim
    t = (cap // align) * align
    while t >= align:
        if dim % t == 0:
            return t
        t -= align
    for t in range(min(cap, dim), 0, -1):     # unaligned fallback, never exceeds cap
        if dim % t == 0:
            return t
    return dim


def _cparams(sem):
    return pltpu.CompilerParams(dimension_semantics=sem, vmem_limit_bytes=VMEM_LIMIT)


# ----------------------------- Pallas kernels ------------------------------

def _dense_kernel(x_ref, w_ref, b_ref, o_ref, *, activation):
    """Weight-stationary matmul (+bias, optional GELU): bf16 operands, f32 math."""
    h = jnp.dot(x_ref[...], w_ref[...], preferred_element_type=jnp.float32) + b_ref[...]
    if activation == "gelu":
        # TODO(synk): HF RoBERTa uses exact erf-GELU; tanh approximation kept for a
        # guaranteed Mosaic lowering (small systematic logit drift vs PyTorch).
        h = 0.5 * h * (1.0 + jnp.tanh(0.7978845608028654 * (h + 0.044715 * h * h * h)))
    o_ref[...] = h.astype(o_ref.dtype)


def _dense_add_ln_kernel(x_ref, w_ref, b_ref, res_ref, g_ref, be_ref, o_ref):
    """Fused weight-stationary matmul + bias + residual add + LayerNorm (f32 math, bf16 out)."""
    h = jnp.dot(x_ref[...], w_ref[...], preferred_element_type=jnp.float32)
    h = h + b_ref[...] + res_ref[...].astype(jnp.float32)
    mu = jnp.mean(h, axis=-1, keepdims=True)
    var = jnp.mean((h - mu) ** 2, axis=-1, keepdims=True)
    o_ref[...] = ((h - mu) * jax.lax.rsqrt(var + 1e-5) * g_ref[...]
                  + be_ref[...]).astype(o_ref.dtype)


def _layernorm_kernel(x_ref, g_ref, b_ref, o_ref):
    """Plain LayerNorm (no residual) — used for the embedding LN."""
    x = x_ref[...].astype(jnp.float32)
    mu = jnp.mean(x, axis=-1, keepdims=True)
    var = jnp.mean((x - mu) ** 2, axis=-1, keepdims=True)
    o_ref[...] = ((x - mu) * jax.lax.rsqrt(var + 1e-5) * g_ref[...]
                  + b_ref[...]).astype(o_ref.dtype)


def _attention_kernel(qkv_ref, bias_ref, o_ref, *, num_heads, head_dim, scale):
    """Per-batch attention over the fused [S, 3H] QKV block.

    Heads stay in the lane dimension (no HBM transposes); the head loop is unrolled at
    trace time.  Scores are f32; P·V runs bf16 on the MXU.
    """
    hidden = num_heads * head_dim
    qkv = qkv_ref[0]                      # [S, 3H] bf16 (loaded once)
    bias = bias_ref[0]                    # [1, S] additive mask bias (0 / -1e9)
    ctxs = []
    for h in range(num_heads):
        q = qkv[:, h * head_dim:(h + 1) * head_dim]                          # [S, Dh]
        k = qkv[:, hidden + h * head_dim:hidden + (h + 1) * head_dim]
        v = qkv[:, 2 * hidden + h * head_dim:2 * hidden + (h + 1) * head_dim]
        s = jax.lax.dot_general(q, k, (((1,), (1,)), ((), ())),
                                preferred_element_type=jnp.float32) * scale  # [S, S]
        s = s + bias
        m = jnp.max(s, axis=-1, keepdims=True)
        p = jnp.exp(s - m)
        p = p * pl.reciprocal(jnp.sum(p, axis=-1, keepdims=True), approx=True)
        ctxs.append(jnp.dot(p.astype(v.dtype), v, preferred_element_type=jnp.float32))
    # TODO(synk): for long S / Dh=64, pack 2 heads per matmul (128-wide contraction) and
    # switch to a flash-style online softmax with KV tiling.
    o_ref[0] = jnp.concatenate(ctxs, axis=-1).astype(o_ref.dtype)            # lane-dense write


def _pool_classifier_kernel(x_ref, mask_ref, w_ref, b_ref, o_ref, sum_ref, cnt_ref):
    """Masked mean-pool accumulated over sequence chunks + (identity) dropout + classifier."""
    @pl.when(pl.program_id(0) == 0)
    def _():
        sum_ref[...] = jnp.zeros_like(sum_ref)
        cnt_ref[...] = jnp.zeros_like(cnt_ref)

    x = x_ref[...].astype(jnp.float32)                    # [B, ts, H]
    m = mask_ref[...]                                     # [B, ts]
    sum_ref[...] += jnp.sum(x * m[:, :, None], axis=1)    # [B, H]
    cnt_ref[...] += jnp.sum(m, axis=1, keepdims=True)     # [B, 1]

    @pl.when(pl.program_id(0) == pl.num_programs(0) - 1)
    def _():
        # counts are integer-valued; clamping at 1.0 matches the PyTorch 1e-9 clamp result
        pooled = sum_ref[...] / jnp.maximum(cnt_ref[...], 1.0)
        o_ref[...] = (jnp.dot(pooled.astype(w_ref.dtype), w_ref[...],
                              preferred_element_type=jnp.float32) + b_ref[...])


# ------------------------------ wrappers ------------------------------------

def dense(x, w, b, *, activation=None):
    M, K = x.shape
    N = w.shape[1]
    tm = _pick_tile(M, TM_CAP, 8)
    kern = functools.partial(_dense_kernel, activation=activation)
    return pl.pallas_call(
        kern,
        out_shape=jax.ShapeDtypeStruct((M, N), jnp.bfloat16),
        grid_spec=pltpu.PrefetchScalarGridSpec(
            num_scalar_prefetch=0,
            grid=(M // tm,),
            in_specs=[pl.BlockSpec((tm, K), lambda i: (i, 0)),
                      pl.BlockSpec((K, N), lambda i: (0, 0)),     # weight-stationary
                      pl.BlockSpec((1, N), lambda i: (0, 0))],
            out_specs=pl.BlockSpec((tm, N), lambda i: (i, 0))),
        compiler_params=_cparams(("parallel",)),
    )(x, w, b.reshape(1, N).astype(jnp.float32))


def dense_add_layernorm(x, w, b, res, g, beta):
    M, K = x.shape
    H = w.shape[1]
    tm = _pick_tile(M, TM_CAP, 8)
    return pl.pallas_call(
        _dense_add_ln_kernel,
        out_shape=jax.ShapeDtypeStruct((M, H), jnp.bfloat16),
        grid_spec=pltpu.PrefetchScalarGridSpec(
            num_scalar_prefetch=0,
            grid=(M // tm,),
            in_specs=[pl.BlockSpec((tm, K), lambda i: (i, 0)),
                      pl.BlockSpec((K, H), lambda i: (0, 0)),     # weight-stationary
                      pl.BlockSpec((1, H), lambda i: (0, 0)),
                      pl.BlockSpec((tm, H), lambda i: (i, 0)),
                      pl.BlockSpec((1, H), lambda i: (0, 0)),
                      pl.BlockSpec((1, H), lambda i: (0, 0))],
            out_specs=pl.BlockSpec((tm, H), lambda i: (i, 0))),
        compiler_params=_cparams(("parallel",)),
    )(x, w, b.reshape(1, H).astype(jnp.float32), res,
      g.reshape(1, H).astype(jnp.float32), beta.reshape(1, H).astype(jnp.float32))


def layernorm(x, g, b):
    M, H = x.shape
    tm = _pick_tile(M, LN_TM_CAP, 8)
    return pl.pallas_call(
        _layernorm_kernel,
        out_shape=jax.ShapeDtypeStruct((M, H), jnp.bfloat16),
        grid_spec=pltpu.PrefetchScalarGridSpec(
            num_scalar_prefetch=0,
            grid=(M // tm,),
            in_specs=[pl.BlockSpec((tm, H), lambda i: (i, 0)),
                      pl.BlockSpec((1, H), lambda i: (0, 0)),
                      pl.BlockSpec((1, H), lambda i: (0, 0))],
            out_specs=pl.BlockSpec((tm, H), lambda i: (i, 0))),
        compiler_params=_cparams(("parallel",)),
    )(x, g.reshape(1, H).astype(jnp.float32), b.reshape(1, H).astype(jnp.float32))


def attention(qkv, bias, *, num_heads):
    # qkv: [B, S, 3H] bf16 (fused Q|K|V along lanes); bias: [B, 1, S] f32
    B, S, three_h = qkv.shape
    H = three_h // 3
    Dh = H // num_heads
    kern = functools.partial(_attention_kernel, num_heads=num_heads,
                             head_dim=Dh, scale=1.0 / math.sqrt(Dh))
    return pl.pallas_call(
        kern,
        out_shape=jax.ShapeDtypeStruct((B, S, H), jnp.bfloat16),
        grid_spec=pltpu.PrefetchScalarGridSpec(
            num_scalar_prefetch=0,
            grid=(B,),
            in_specs=[pl.BlockSpec((1, S, three_h), lambda b: (b, 0, 0)),
                      pl.BlockSpec((1, 1, S), lambda b: (b, 0, 0))],
            out_specs=pl.BlockSpec((1, S, H), lambda b: (b, 0, 0))),
        compiler_params=_cparams(("parallel",)),
    )(qkv, bias)


def pool_classify(seq_out, mask_f, w_p, b_p, num_labels):
    # seq_out: [B, S, H] bf16; mask_f: [B, S] f32; w_p: [H, Lp] bf16; b_p: [1, Lp] f32
    B, S, H = seq_out.shape
    Lp = w_p.shape[1]
    ts = _pick_tile(S, POOL_TS_CAP, 128)
    out = pl.pallas_call(
        _pool_classifier_kernel,
        out_shape=jax.ShapeDtypeStruct((B, Lp), jnp.float32),
        grid_spec=pltpu.PrefetchScalarGridSpec(
            num_scalar_prefetch=0,
            grid=(S // ts,),
            in_specs=[pl.BlockSpec((B, ts, H), lambda s: (0, s, 0)),
                      pl.BlockSpec((B, ts), lambda s: (0, s)),
                      pl.BlockSpec((H, Lp), lambda s: (0, 0)),
                      pl.BlockSpec((1, Lp), lambda s: (0, 0))],
            out_specs=pl.BlockSpec((B, Lp), lambda s: (0, 0)),
            scratch_shapes=[pltpu.VMEM((B, H), jnp.float32),
                            pltpu.VMEM((B, 1), jnp.float32)]),
        compiler_params=_cparams(("arbitrary",)),
    )(seq_out, mask_f, w_p, b_p)
    return out[:, :num_labels]


# --------------------------- parameter handling ------------------------------

def prepare_params(params):
    """Cast matmul weights to bf16, fuse Q/K/V into one [H,3H] matmul, pad classifier lanes."""
    bf = lambda a: a.astype(jnp.bfloat16)
    H, L = params['cls_w'].shape
    Lp = ((L + 127) // 128) * 128            # lane-dense classifier output, sliced afterwards
    cls_w_p = jnp.zeros((H, Lp), jnp.bfloat16).at[:, :L].set(bf(params['cls_w']))
    cls_b_p = jnp.zeros((1, Lp), jnp.float32).at[:, :L].set(params['cls_b'].astype(jnp.float32))
    prepared = {
        'word_emb': params['word_emb'],
        'pos_emb': params['pos_emb'],
        'type_emb': params['type_emb'],
        'emb_ln_g': params['emb_ln_g'], 'emb_ln_b': params['emb_ln_b'],
        'cls_w_p': cls_w_p, 'cls_b_p': cls_b_p, 'num_labels': L,
        'layers': [],
    }
    for lp in params['layers']:
        prepared['layers'].append({
            'qkv_w': bf(jnp.concatenate([lp['q_w'], lp['k_w'], lp['v_w']], axis=1)),
            'qkv_b': jnp.concatenate([lp['q_b'], lp['k_b'], lp['v_b']]),
            'o_w': bf(lp['o_w']), 'o_b': lp['o_b'],
            'ln1_g': lp['ln1_g'], 'ln1_b': lp['ln1_b'],
            'fc1_w': bf(lp['fc1_w']), 'fc1_b': lp['fc1_b'],
            'fc2_w': bf(lp['fc2_w']), 'fc2_b': lp['fc2_b'],
            'ln2_g': lp['ln2_g'], 'ln2_b': lp['ln2_b'],
        })
    return prepared


def init_params(key, *, vocab, max_pos, hidden, ffn, layers, num_labels):
    def nrm(k, shape):
        return 0.02 * jax.random.normal(k, shape, jnp.float32)

    keys = jax.random.split(key, 4 + layers)
    params = {
        'word_emb': nrm(keys[0], (vocab, hidden)),
        'pos_emb': nrm(keys[1], (max_pos, hidden)),
        'type_emb': nrm(keys[2], (1, hidden)),
        'emb_ln_g': jnp.ones((hidden,), jnp.float32),
        'emb_ln_b': jnp.zeros((hidden,), jnp.float32),
        'cls_w': nrm(keys[3], (hidden, num_labels)),
        'cls_b': jnp.zeros((num_labels,), jnp.float32),
        'layers': [],
    }
    for i in range(layers):
        lk = jax.random.split(keys[4 + i], 6)
        params['layers'].append({
            'q_w': nrm(lk[0], (hidden, hidden)), 'q_b': jnp.zeros((hidden,), jnp.float32),
            'k_w': nrm(lk[1], (hidden, hidden)), 'k_b': jnp.zeros((hidden,), jnp.float32),
            'v_w': nrm(lk[2], (hidden, hidden)), 'v_b': jnp.zeros((hidden,), jnp.float32),
            'o_w': nrm(lk[3], (hidden, hidden)), 'o_b': jnp.zeros((hidden,), jnp.float32),
            'ln1_g': jnp.ones((hidden,), jnp.float32), 'ln1_b': jnp.zeros((hidden,), jnp.float32),
            'fc1_w': nrm(lk[4], (hidden, ffn)), 'fc1_b': jnp.zeros((ffn,), jnp.float32),
            'fc2_w': nrm(lk[5], (ffn, hidden)), 'fc2_b': jnp.zeros((hidden,), jnp.float32),
            'ln2_g': jnp.ones((hidden,), jnp.float32), 'ln2_b': jnp.zeros((hidden,), jnp.float32),
        })
    return params


# --------------------------- model forward pass ------------------------------

def bert_tone_classifier_forward(params, input_ids, attention_mask, *, num_heads):
    B, S = input_ids.shape
    H = params['word_emb'].shape[1]
    mask_f = attention_mask.astype(jnp.float32)

    # --- embeddings (token/position gathers are XLA glue) ---
    word = jnp.take(params['word_emb'], input_ids, axis=0)
    pos_ids = (jnp.cumsum(attention_mask, axis=1) * attention_mask).astype(jnp.int32) + 1
    pos = jnp.take(params['pos_emb'], pos_ids, axis=0)
    tok = params['type_emb'][0][None, None, :]
    emb = (word + pos + tok).reshape(B * S, H).astype(jnp.bfloat16)
    x = layernorm(emb, params['emb_ln_g'], params['emb_ln_b'])          # bf16 [B*S, H]

    # additive attention bias (0 = attend, -1e9 = pad); shared across layers/heads
    attn_bias = ((mask_f - 1.0) * 1e9).reshape(B, 1, S)

    # --- transformer layers ---
    for lp in params['layers']:
        x_res = x
        qkv = dense(x, lp['qkv_w'], lp['qkv_b'])                        # [B*S, 3H] bf16
        ctx = attention(qkv.reshape(B, S, 3 * H), attn_bias,
                        num_heads=num_heads)                            # [B, S, H] bf16
        ctx = ctx.reshape(B * S, H)                                     # contiguous (free)
        x = dense_add_layernorm(ctx, lp['o_w'], lp['o_b'], x_res,
                                lp['ln1_g'], lp['ln1_b'])               # attn + res + LN1
        ffn = dense(x, lp['fc1_w'], lp['fc1_b'], activation='gelu')     # [B*S, F]
        x = dense_add_layernorm(ffn, lp['fc2_w'], lp['fc2_b'], x,
                                lp['ln2_g'], lp['ln2_b'])               # fc2 + res + LN2

    seq_out = x.reshape(B, S, H)

    # masked mean pooling + (identity) dropout + classifier, tiled over sequence chunks
    logits = pool_classify(seq_out, mask_f, params['cls_w_p'], params['cls_b_p'],
                           params['num_labels'])
    return logits


# --------------------------------- main ---------------------------------------

if __name__ == "__main__":
    B, S = 2, 8
    HIDDEN, HEADS, FFN, LAYERS = 32, 4, 64, 2
    VOCAB, MAX_POS, NUM_LABELS = 64, 16, 6

    key = jax.random.PRNGKey(0)
    pkey, ikey = jax.random.split(key)

    raw_params = init_params(pkey, vocab=VOCAB, max_pos=MAX_POS, hidden=HIDDEN,
                             ffn=FFN, layers=LAYERS, num_labels=NUM_LABELS)
    params = prepare_params(raw_params)

    input_ids = jax.random.randint(ikey, (B, S), 2, VOCAB, dtype=jnp.int32)
    attention_mask = jnp.array([[1, 1, 1, 1, 1, 1, 1, 1],
                                [1, 1, 1, 1, 1, 0, 0, 0]], dtype=jnp.int32)

    logits = bert_tone_classifier_forward(params, input_ids, attention_mask,
                                          num_heads=HEADS)
    jax.block_until_ready(logits)
    assert logits.shape == (B, NUM_LABELS)
    assert bool(jnp.all(jnp.isfinite(logits)))
    print("KERNEL_OK")
</pallas_src>

<mosaic_0001>
module attributes {stable_mosaic.version = 11 : i64} {
  func.func @_layernorm_kernel(%arg0: i32, %arg1: memref<16x32xbf16, #tpu.memory_space<vmem>>, %arg2: memref<1x32xf32, #tpu.memory_space<vmem>>, %arg3: memref<1x32xf32, #tpu.memory_space<vmem>>, %arg4: memref<16x32xbf16, #tpu.memory_space<vmem>>) attributes {dimension_semantics = [#tpu.dimension_semantics<parallel>], iteration_bounds = array<i64: 1>, scalar_prefetch = 0 : i64, scratch_operands = 0 : i64, tpu.core_type = #tpu.core_type<tc>, window_params = [{transform_indices = @transform_0, window_bounds = array<i64: 16, 32>}, {pipeline_mode = #tpu.pipeline_mode<synchronous>, transform_indices = @transform_1, window_bounds = array<i64: 1, 32>}, {pipeline_mode = #tpu.pipeline_mode<synchronous>, transform_indices = @transform_2, window_bounds = array<i64: 1, 32>}, {transform_indices = @transform_3, window_bounds = array<i64: 16, 32>}]} {
    %c0 = arith.constant 0 : index
    %c0_0 = arith.constant 0 : index
    %0 = vector.load %arg1[%c0, %c0_0] : memref<16x32xbf16, #tpu.memory_space<vmem>>, vector<16x32xbf16>
    %1 = arith.extf %0 : vector<16x32xbf16> to vector<16x32xf32>
    %cst = arith.constant dense<0.000000e+00> : vector<16xf32>
    %2 = vector.multi_reduction <add>, %1, %cst [1] : vector<16x32xf32> to vector<16xf32>
    %3 = vector.shape_cast %2 : vector<16xf32> to vector<16x1xf32>
    %cst_1 = arith.constant 3.200000e+01 : f32
    %4 = vector.broadcast %cst_1 : f32 to vector<16x1xf32>
    %5 = arith.divf %3, %4 : vector<16x1xf32>
    %6 = vector.broadcast %5 : vector<16x1xf32> to vector<16x32xf32>
    %7 = arith.subf %1, %6 : vector<16x32xf32>
    %8 = arith.mulf %7, %7 : vector<16x32xf32>
    %cst_2 = arith.constant dense<0.000000e+00> : vector<16xf32>
    %9 = vector.multi_reduction <add>, %8, %cst_2 [1] : vector<16x32xf32> to vector<16xf32>
    %10 = vector.shape_cast %9 : vector<16xf32> to vector<16x1xf32>
    %cst_3 = arith.constant 3.200000e+01 : f32
    %11 = vector.broadcast %cst_3 : f32 to vector<16x1xf32>
    %12 = arith.divf %10, %11 : vector<16x1xf32>
    %13 = vector.broadcast %5 : vector<16x1xf32> to vector<16x32xf32>
    %14 = arith.subf %1, %13 : vector<16x32xf32>
    %cst_4 = arith.constant 9.99999974E-6 : f32
    %15 = vector.broadcast %cst_4 : f32 to vector<16x1xf32>
    %16 = arith.addf %12, %15 : vector<16x1xf32>
    %17 = math.rsqrt %16 : vector<16x1xf32>
    %18 = vector.broadcast %17 : vector<16x1xf32> to vector<16x32xf32>
    %19 = arith.mulf %14, %18 : vector<16x32xf32>
    %c0_5 = arith.constant 0 : index
    %c0_6 = arith.constant 0 : index
    %20 = vector.load %arg2[%c0_5, %c0_6] : memref<1x32xf32, #tpu.memory_space<vmem>>, vector<1x32xf32>
    %21 = vector.broadcast %20 : vector<1x32xf32> to vector<16x32xf32>
    %22 = arith.mulf %19, %21 : vector<16x32xf32>
    %c0_7 = arith.constant 0 : index
    %c0_8 = arith.constant 0 : index
    %23 = vector.load %arg3[%c0_7, %c0_8] : memref<1x32xf32, #tpu.memory_space<vmem>>, vector<1x32xf32>
    %24 = vector.broadcast %23 : vector<1x32xf32> to vector<16x32xf32>
    %25 = arith.addf %22, %24 : vector<16x32xf32>
    %26 = arith.truncf %25 : vector<16x32xf32> to vector<16x32xbf16>
    %c0_9 = arith.constant 0 : index
    %c0_10 = arith.constant 0 : index
    %27 = vector.load %arg4[%c0_9, %c0_10] : memref<16x32xbf16, #tpu.memory_space<vmem>>, vector<16x32xbf16>
    tpu.vector_store %arg4[%c0_9, %c0_10], %26 {strides = array<i32>} : memref<16x32xbf16, #tpu.memory_space<vmem>>, vector<16x32xbf16>,
    return
  }
  func.func @transform_0(%arg0: i32) -> (i32, i32) {
    %c0_i32 = arith.constant 0 : i32
    %c0_i32_0 = arith.constant 0 : i32
    return %arg0, %c0_i32 : i32, i32
  }
  func.func @transform_1(%arg0: i32) -> (i32, i32) {
    %c0_i32 = arith.constant 0 : i32
    %c0_i32_0 = arith.constant 0 : i32
    %c0_i32_1 = arith.constant 0 : i32
    return %c0_i32, %c0_i32_0 : i32, i32
  }
  func.func @transform_2(%arg0: i32) -> (i32, i32) {
    %c0_i32 = arith.constant 0 : i32
    %c0_i32_0 = arith.constant 0 : i32
    %c0_i32_1 = arith.constant 0 : i32
    return %c0_i32, %c0_i32_0 : i32, i32
  }
  func.func @transform_3(%arg0: i32) -> (i32, i32) {
    %c0_i32 = arith.constant 0 : i32
    %c0_i32_0 = arith.constant 0 : i32
    return %arg0, %c0_i32 : i32, i32
  }
}

</mosaic_0001>

<llo_original>
// kernel: tpu_custom_call.1
$region0: #{tpu_custom_call.1}
  #allocation0 [shape = 'u32[]', space=smem, size = 0x4, offset = 0x4, fixed_abs, tag = 'smem constant byte address 0x4 - core index']
  #allocation1 [shape = 'u32[144,128]{1,0:T(1,128)}', space=vmem, size = 0x12000, scoped, tag = 'internal scratch']
  %s0 = inlined_call_operand.hbm [shape: bf16[16,32], index: 0, kind: input, shape index: {}]
  %s1 = inlined_call_operand.vmem [shape: f32[1,32], index: 1, kind: input, shape index: {}]
  %s2 = inlined_call_operand.vmem [shape: f32[1,32], index: 2, kind: input, shape index: {}]
  %s3 = inlined_call_operand.hbm [shape: bf16[16,32], index: 3, kind: output, shape index: {}]
  %s4 = sld [smem:[#allocation0]]
  $region26: #{tpu_custom_call.1} parent=0
    _
  %s6 = ssub.s32 1, %s4
  %s7 = scalar_select 0, %s6, %s4
  $region1: #{tpu_custom_call.1} parent=0
    #allocation2 [shape = 'u8[4096]{0}', space=vmem, size = 0x1000, scoped, tag = 'input window, operand 0, single buffered']
    #allocation3 [shape = 's32[1]{0}', space=sflag, size = 0x4, scoped, tag = 'scoped memory for tpu_custom_call.1']
    #allocation4 [shape = 's32[1]{0}', space=sflag, size = 0x4, scoped, tag = 'scoped memory for tpu_custom_call.1']
    #allocation5 [shape = 'u8[4096]{0}', space=vmem, size = 0x1000, scoped, tag = 'output window, operand 0, single buffered']
    %8 = vsyncpa [#allocation3], 0
    %9 = vsyncpa [#allocation4], 0
    // Predicated region
    $region2: #{tpu_custom_call.1} parent=1 // pred_check
      _
    $region3: #{tpu_custom_call.1} parent=1 // pred_check_branch
      %11 = sbr.rel (0) target = $region5
    $region4: #{tpu_custom_call.1} parent=1 // pred_region
      %s13 = ssub.s32 128, 128
      %14 = vsyncadd [#allocation3], %s13
      %s15 = sshll.u32 [#allocation2], 4
      %s16 = int_to_ptr.vmem [resolvable:$true] %s15
      %21 = dma.hbm_to_vmem [thread:$0]  %s0, 128, %s16, [#allocation3], 64, 64, 4
    $region5: #{tpu_custom_call.1} parent=1 // pred_fallthru
      _
    // Predicated region
    $region6: #{tpu_custom_call.1} parent=1 // pred_check
      _
    $region7: #{tpu_custom_call.1} parent=1 // pred_check_branch
      %23 = sbr.rel (0) target = $region9
    $region8: #{tpu_custom_call.1} parent=1 // pred_region
      _
    $region9: #{tpu_custom_call.1} parent=1 // pred_fallthru
      _
    // Predicated region
    $region10: #{tpu_custom_call.1} parent=1 // pred_check
      _
    $region11: #{tpu_custom_call.1} parent=1 // pred_check_branch
      %25 = sbr.rel (0) target = $region13
    $region12: #{tpu_custom_call.1} parent=1 // pred_region
      _
    $region13: #{tpu_custom_call.1} parent=1 // pred_fallthru
      _
    // Predicated region
    $region14: #{tpu_custom_call.1} parent=1 // pred_check
      _
    $region15: #{tpu_custom_call.1} parent=1 // pred_check_branch
      %27 = sbr.rel (0) target = $region17
    $region16: #{tpu_custom_call.1} parent=1 // pred_region
      %28 = dma.done [#allocation3], 128
    $region17: #{tpu_custom_call.1} parent=1 // pred_fallthru
      _
    %v29 = vld [vmem:[#allocation2] sm:$0xf]
    %v30 = vld [vmem:[#allocation2 + $0x4] sm:$0xf]
    %v31 = vunpack.c.l.bf16 %v29
    %v32 = vunpack.c.l.bf16 %v30
    %vm33 = vcmask 261120
    %v34 = vsel %vm33, %v31, 0.0
    %35 = vadd.xlane.f32.xlu0 %v34
    %v36 = vpop.xlane.xlu0 %35
    %v37 = vsel %vm33, %v32, 0.0
    %38 = vadd.xlane.f32.xlu0 %v37
    %v39 = vpop.xlane.xlu0 %38
    %v40 = vrcp.pop 32.0
    %v41 = vmul.f32 %v36, %v40
    %v42 = vmul.f32 %v39, %v40
    %v43 = vsub.f32 %v31, %v41
    %v44 = vsub.f32 %v32, %v42
    %v45 = vmul.f32 %v43, %v43
    %v46 = vmul.f32 %v44, %v44
    %v47 = vsel %vm33, %v45, 0.0
    %48 = vadd.xlane.f32.xlu0 %v47
    %v49 = vpop.xlane.xlu0 %48
    %v50 = vsel %vm33, %v46, 0.0
    %51 = vadd.xlane.f32.xlu0 %v50
    %v52 = vpop.xlane.xlu0 %51
    %v53 = vmul.f32 %v49, %v40
    %v54 = vmul.f32 %v52, %v40
    %v55 = vadd.f32 %v53, 1e-05
    %v56 = vadd.f32 %v54, 1e-05
    %v57 = vrsqrt.pop %v55
    %v58 = vrsqrt.pop %v56
    %v59 = vmul.f32 %v43, %v57
    %v60 = vmul.f32 %v44, %v58
    %v61 = vld [vmem:[%s1] sm:$0x1]
    %v63 = vlaneseq
    %v64 = vshrl.u32 %v63, 7
    %v65 = vsub.s32 0, %v64
    %v66 = vrot.slane %v61, %v65
    %v68 = vmul.f32 %v59, %v66
    %v69 = vmul.f32 %v60, %v66
    %v70 = vld [vmem:[%s2] sm:$0x1]
    %v72 = vlaneseq
    %v73 = vshrl.u32 %v72, 7
    %v74 = vsub.s32 0, %v73
    %v75 = vrot.slane %v70, %v74
    %v77 = vadd.f32 %v68, %v75
    %v78 = vadd.f32 %v69, %v75
    %v79 = vpack.c.bf16 %v78, %v77
    %v81 = vunpack.c.l.b16 %v79
    %v82 = vunpack.c.h.b16 %v79
    %v83 = vpack.c.b16 %v81, %v81
    %v84 = vpack.c.b16 %v82, %v82
    %vm87 = vcmask 257024
    %88 = vst.msk [vmem:[#allocation5] sm:$0xf] %vm87, %v83
    %89 = vst.msk [vmem:[#allocation5 + $0x4] sm:$0xf] %vm87, %v84
    // Predicated region
    $region18: #{tpu_custom_call.1} parent=1 // pred_check
      _
    $region19: #{tpu_custom_call.1} parent=1 // pred_check_branch
      %91 = sbr.rel (0) target = $region21
    $region20: #{tpu_custom_call.1} parent=1 // pred_region
      %s93 = ssub.s32 128, 128
      %94 = vsyncadd [#allocation4], %s93
      %s95 = sshll.u32 [#allocation5], 4
      %s96 = int_to_ptr.vmem [resolvable:$true] %s95
      %101 = dma.vmem_to_hbm [thread:$0]  %s96, 128, %s3, [#allocation4], 64, 64, 4
    $region21: #{tpu_custom_call.1} parent=1 // pred_fallthru
      _
    // Predicated region
    $region22: #{tpu_custom_call.1} parent=1 // pred_check
      _
    $region23: #{tpu_custom_call.1} parent=1 // pred_check_branch
      %103 = sbr.rel (0) target = $region25
    $region24: #{tpu_custom_call.1} parent=1 // pred_region
      %104 = dma.done [#allocation4], 128
    $region25: #{tpu_custom_call.1} parent=1 // pred_fallthru
      _
    %105 = vsyncpa [#allocation3], 1
    %106 = vsyncpa [#allocation4], 1

</llo_original>
